<compile_context>
chip_gen: v5e
topology: v5e:2x2
jax: 0.10.0
libtpu: 0.0.40
codegen_flags: <defaults>
</compile_context>

<pallas_src>
import functools

import jax
import jax.numpy as jnp
from jax import lax
from jax.experimental import pallas as pl
from jax.experimental.pallas import tpu as pltpu


def _ffn_kernel(x_ref, w1_ref, b1_ref, w2_ref, b2_ref, o_ref, *, precision):
    # x_ref:  (tm, dim)       row tile of flattened tokens
    # w1_ref: (dim, hidden)   full first-layer weight (pre-transposed)
    # b1_ref: (1, hidden)
    # w2_ref: (hidden, dim)   full second-layer weight (pre-transposed)
    # b2_ref: (1, dim)
    # o_ref:  (tm, dim)

    # Linear 1 — MXU matmul, f32 accumulate.
    h = jnp.dot(x_ref[...], w1_ref[...],
                preferred_element_type=jnp.float32, precision=precision)
    h = h + b1_ref[...].astype(jnp.float32)

    # SiLU: h * sigmoid(h) in f32 (sigmoid -> EUP, mul -> VPU).
    h = h * jax.nn.sigmoid(h)

    # Dropout(p=0.0) is the identity -> nothing to do.
    # TODO(synk): for nonzero training-mode dropout, build the mask in-kernel
    # with pltpu.prng_seed + pltpu.prng_random_bits.

    # Linear 2 — cast the f32 intermediate back to the weight dtype so bf16
    # inputs keep the fast bf16 MXU path (no-op for f32 weights).
    y = jnp.dot(h.astype(w2_ref.dtype), w2_ref[...],
                preferred_element_type=jnp.float32, precision=precision)
    y = y + b2_ref[...].astype(jnp.float32)

    o_ref[...] = y.astype(o_ref.dtype)


def _round_up(v, mult):
    return pl.cdiv(v, mult) * mult


def _vmem_capacity_bytes():
    try:
        return int(pltpu.get_tpu_info().vmem_capacity_bytes)
    except Exception:
        return 64 * 1024 * 1024  # conservative fallback (v7x-sized)


@functools.partial(jax.jit, static_argnames=("tm",))
def feed_forward(x, w1, b1, w2, b2, *, tm=None):
    """x: (batch, seq, dim) -> (batch, seq, dim).

    Weights already transposed vs. PyTorch: w1: (dim, hidden), b1: (hidden,),
    w2: (hidden, dim), b2: (dim,).
    """
    batch, seq, dim = x.shape
    hidden = w1.shape[1]
    m = batch * seq

    x_bytes = x.dtype.itemsize
    w_bytes = w1.dtype.itemsize
    # dtype-correct sublane packing: 8 for f32, 16 for bf16, 32 for int8/fp8.
    sublane = {4: 8, 2: 16, 1: 32}.get(x_bytes, 8)

    # Faithful f32 matmul for f32 inputs (matches PyTorch Linear numerics);
    # for max MXU throughput on v6e/v7x feed bf16 activations + weights.
    precision = lax.Precision.HIGHEST if x.dtype == jnp.float32 else None

    # --- VMEM budget (per chip) -------------------------------------------
    capacity = _vmem_capacity_bytes()                     # 128 MiB v5e/v6e, 64 MiB v7x
    usable = min(int(capacity * 0.75), capacity - (8 << 20))

    # Weights/biases are single-buffered (Buffered(1)) and resident.
    weights_bytes = (dim * hidden + hidden * dim) * w_bytes + (hidden + dim) * 4
    # Per-row cost: double-buffered x and out tiles + f32 h / y temporaries.
    per_row = 2 * dim * x_bytes + 2 * dim * x_bytes + hidden * 4 + dim * 4

    # Bigger default row tile on 128 MiB chips (v5e/v6e); 256 on v7x.
    target_tm = tm if tm is not None else (512 if capacity >= (96 << 20) else 256)
    if usable > weights_bytes:
        tm_budget = max(sublane, (usable - weights_bytes) // per_row)
    else:
        # TODO(synk): for very large dim*hidden add a hidden-block reduction
        # grid axis ("arbitrary", f32 accumulator scratch, pl.when
        # init/finalize) instead of holding W1/W2 + (tm, hidden) h resident.
        tm_budget = sublane

    if m <= 2 * sublane:
        tm_eff = m                                         # one full-extent block
    else:
        tm_eff = max(sublane, min(int(target_tm), int(tm_budget)))
        tm_eff = (tm_eff // sublane) * sublane
        # Keep >= 2 row tiles so v7x's two TensorCores both get work.
        tm_eff = min(tm_eff, _round_up(pl.cdiv(m, 2), sublane))
    grid_m = pl.cdiv(m, tm_eff)

    footprint = weights_bytes + tm_eff * per_row
    vmem_limit = int(min(max(footprint * 5 // 4 + (2 << 20), 16 << 20),
                         capacity - (4 << 20)))

    # Advisory cost estimate so XLA schedules surrounding ops sensibly.
    flops = 4 * m * dim * hidden + 4 * m * hidden + 2 * m * dim
    transcendentals = m * hidden
    bytes_accessed = 2 * m * dim * x_bytes + weights_bytes

    # TODO(synk): on v6e/v7x, padding hidden (and dim, when the producer can
    # supply it lane-dense) to a multiple of 256 would fill the 256-wide MXU;
    # omitted here to avoid extra HBM passes over the activations.
    out2d = pl.pallas_call(
        functools.partial(_ffn_kernel, precision=precision),
        out_shape=jax.ShapeDtypeStruct((m, dim), x.dtype),
        grid_spec=pltpu.PrefetchScalarGridSpec(
            num_scalar_prefetch=0,
            grid=(grid_m,),
            in_specs=[
                # Row tile of activations (double-buffered by default).
                pl.BlockSpec((tm_eff, dim), lambda i: (i, 0)),
                # Resident weights/biases: constant index_map -> fetched once,
                # single buffer saves VMEM.
                pl.BlockSpec((dim, hidden), lambda i: (0, 0),
                             pipeline_mode=pl.Buffered(1)),
                pl.BlockSpec((1, hidden), lambda i: (0, 0),
                             pipeline_mode=pl.Buffered(1)),
                pl.BlockSpec((hidden, dim), lambda i: (0, 0),
                             pipeline_mode=pl.Buffered(1)),
                pl.BlockSpec((1, dim), lambda i: (0, 0),
                             pipeline_mode=pl.Buffered(1)),
            ],
            out_specs=pl.BlockSpec((tm_eff, dim), lambda i: (i, 0)),
        ),
        compiler_params=pltpu.CompilerParams(
            dimension_semantics=("parallel",),   # row tiles shard across TCs (v7x)
            vmem_limit_bytes=vmem_limit,
        ),
        cost_estimate=pl.CostEstimate(
            flops=flops,
            transcendentals=transcendentals,
            bytes_accessed=bytes_accessed,
        ),
    )(x.reshape(m, dim), w1, b1.reshape(1, hidden), w2, b2.reshape(1, dim))

    return out2d.reshape(batch, seq, dim)


def _reference(x, w1, b1, w2, b2):
    h = jnp.dot(x, w1, precision=lax.Precision.HIGHEST) + b1
    h = h * jax.nn.sigmoid(h)
    return jnp.dot(h, w2, precision=lax.Precision.HIGHEST) + b2


if __name__ == "__main__":
    # Small shapes consistent with the module: tokens (batch, seq, dim).
    batch, seq, dim, hidden = 2, 8, 32, 64

    key = jax.random.PRNGKey(0)
    kx, kw1, kb1, kw2, kb2 = jax.random.split(key, 5)

    x = jax.random.normal(kx, (batch, seq, dim), dtype=jnp.float32)

    # Deterministic parameter init (exact values don't matter — shapes do).
    # Stored pre-transposed: (in, out).
    w1 = jax.random.normal(kw1, (dim, hidden), dtype=jnp.float32) * 0.05
    b1 = jax.random.normal(kb1, (hidden,), dtype=jnp.float32) * 0.05
    w2 = jax.random.normal(kw2, (hidden, dim), dtype=jnp.float32) * 0.05
    b2 = jax.random.normal(kb2, (dim,), dtype=jnp.float32) * 0.05

    out = feed_forward(x, w1, b1, w2, b2)
    out = jax.block_until_ready(out)

    ref = _reference(x, w1, b1, w2, b2)
    assert out.shape == (batch, seq, dim)
    assert jnp.allclose(out, ref, atol=1e-5, rtol=1e-5), "mismatch vs. reference"

    print("KERNEL_OK")
</pallas_src>

<mosaic_0001>
module attributes {stable_mosaic.version = 11 : i64} {
  func.func @_ffn_kernel(%arg0: i32, %arg1: memref<16x32xf32, #tpu.memory_space<vmem>>, %arg2: memref<32x64xf32, #tpu.memory_space<vmem>>, %arg3: memref<1x64xf32, #tpu.memory_space<vmem>>, %arg4: memref<64x32xf32, #tpu.memory_space<vmem>>, %arg5: memref<1x32xf32, #tpu.memory_space<vmem>>, %arg6: memref<16x32xf32, #tpu.memory_space<vmem>>) attributes {dimension_semantics = [#tpu.dimension_semantics<parallel>], iteration_bounds = array<i64: 1>, scalar_prefetch = 0 : i64, scratch_operands = 0 : i64, tpu.core_type = #tpu.core_type<tc>, window_params = [{transform_indices = @transform_0, window_bounds = array<i64: 16, 32>}, {pipeline_mode = #tpu.pipeline_mode<synchronous>, transform_indices = @transform_1, window_bounds = array<i64: 32, 64>}, {pipeline_mode = #tpu.pipeline_mode<synchronous>, transform_indices = @transform_2, window_bounds = array<i64: 1, 64>}, {pipeline_mode = #tpu.pipeline_mode<synchronous>, transform_indices = @transform_3, window_bounds = array<i64: 64, 32>}, {pipeline_mode = #tpu.pipeline_mode<synchronous>, transform_indices = @transform_4, window_bounds = array<i64: 1, 32>}, {transform_indices = @transform_5, window_bounds = array<i64: 16, 32>}]} {
    %c0 = arith.constant 0 : index
    %c0_0 = arith.constant 0 : index
    %0 = vector.load %arg1[%c0, %c0_0] : memref<16x32xf32, #tpu.memory_space<vmem>>, vector<16x32xf32>
    %c0_1 = arith.constant 0 : index
    %c0_2 = arith.constant 0 : index
    %1 = vector.load %arg2[%c0_1, %c0_2] : memref<32x64xf32, #tpu.memory_space<vmem>>, vector<32x64xf32>
    %cst = arith.constant dense<0.000000e+00> : vector<16x64xf32>
    %2 = tpu.matmul %0, %1, %cst {dimension_numbers = #tpu.dot_dimension_numbers<[1], [0], [0], [1], [0, 0, 1, 1], [], []>, precision = #tpu.contract_precision<fp32>} : vector<16x32xf32>, vector<32x64xf32>, vector<16x64xf32> -> vector<16x64xf32>
    %c0_3 = arith.constant 0 : index
    %c0_4 = arith.constant 0 : index
    %3 = vector.load %arg3[%c0_3, %c0_4] : memref<1x64xf32, #tpu.memory_space<vmem>>, vector<1x64xf32>
    %4 = vector.broadcast %3 : vector<1x64xf32> to vector<16x64xf32>
    %5 = arith.addf %2, %4 : vector<16x64xf32>
    %6 = arith.negf %5 : vector<16x64xf32>
    %7 = math.exp %6 : vector<16x64xf32>
    %cst_5 = arith.constant 1.000000e+00 : f32
    %8 = vector.broadcast %cst_5 : f32 to vector<16x64xf32>
    %9 = arith.addf %8, %7 : vector<16x64xf32>
    %10 = arith.divf %8, %9 : vector<16x64xf32>
    %11 = arith.mulf %5, %10 : vector<16x64xf32>
    %c0_6 = arith.constant 0 : index
    %c0_7 = arith.constant 0 : index
    %12 = vector.load %arg4[%c0_6, %c0_7] : memref<64x32xf32, #tpu.memory_space<vmem>>, vector<64x32xf32>
    %cst_8 = arith.constant dense<0.000000e+00> : vector<16x32xf32>
    %13 = tpu.matmul %11, %12, %cst_8 {dimension_numbers = #tpu.dot_dimension_numbers<[1], [0], [0], [1], [0, 0, 1, 1], [], []>, precision = #tpu.contract_precision<fp32>} : vector<16x64xf32>, vector<64x32xf32>, vector<16x32xf32> -> vector<16x32xf32>
    %c0_9 = arith.constant 0 : index
    %c0_10 = arith.constant 0 : index
    %14 = vector.load %arg5[%c0_9, %c0_10] : memref<1x32xf32, #tpu.memory_space<vmem>>, vector<1x32xf32>
    %15 = vector.broadcast %14 : vector<1x32xf32> to vector<16x32xf32>
    %16 = arith.addf %13, %15 : vector<16x32xf32>
    %c0_11 = arith.constant 0 : index
    %c0_12 = arith.constant 0 : index
    %17 = vector.load %arg6[%c0_11, %c0_12] : memref<16x32xf32, #tpu.memory_space<vmem>>, vector<16x32xf32>
    tpu.vector_store %arg6[%c0_11, %c0_12], %16 {strides = array<i32>} : memref<16x32xf32, #tpu.memory_space<vmem>>, vector<16x32xf32>,
    return
  }
  func.func @transform_0(%arg0: i32) -> (i32, i32) {
    %c0_i32 = arith.constant 0 : i32
    %c0_i32_0 = arith.constant 0 : i32
    return %arg0, %c0_i32 : i32, i32
  }
  func.func @transform_1(%arg0: i32) -> (i32, i32) {
    %c0_i32 = arith.constant 0 : i32
    %c0_i32_0 = arith.constant 0 : i32
    %c0_i32_1 = arith.constant 0 : i32
    return %c0_i32, %c0_i32_0 : i32, i32
  }
  func.func @transform_2(%arg0: i32) -> (i32, i32) {
    %c0_i32 = arith.constant 0 : i32
    %c0_i32_0 = arith.constant 0 : i32
    %c0_i32_1 = arith.constant 0 : i32
    return %c0_i32, %c0_i32_0 : i32, i32
  }
  func.func @transform_3(%arg0: i32) -> (i32, i32) {
    %c0_i32 = arith.constant 0 : i32
    %c0_i32_0 = arith.constant 0 : i32
    %c0_i32_1 = arith.constant 0 : i32
    return %c0_i32, %c0_i32_0 : i32, i32
  }
  func.func @transform_4(%arg0: i32) -> (i32, i32) {
    %c0_i32 = arith.constant 0 : i32
    %c0_i32_0 = arith.constant 0 : i32
    %c0_i32_1 = arith.constant 0 : i32
    return %c0_i32, %c0_i32_0 : i32, i32
  }
  func.func @transform_5(%arg0: i32) -> (i32, i32) {
    %c0_i32 = arith.constant 0 : i32
    %c0_i32_0 = arith.constant 0 : i32
    return %arg0, %c0_i32 : i32, i32
  }
}

</mosaic_0001>

<llo_original>
// kernel: feed_forward.1
$region0: #{feed_forward.1}
  #allocation0 [shape = 'u32[]', space=smem, size = 0x4, offset = 0x4, fixed_abs, tag = 'smem constant byte address 0x4 - core index']
  #allocation1 [shape = 'u32[72,128]{1,0:T(1,128)}', space=vmem, size = 0x9000, scoped, tag = 'internal scratch']
  %s0 = inlined_call_operand.vmem [shape: f32[16,32], index: 0, kind: input, shape index: {}]
  %s1 = inlined_call_operand.vmem [shape: f32[32,64], index: 1, kind: input, shape index: {}]
  %s2 = inlined_call_operand.vmem [shape: f32[1,64], index: 2, kind: input, shape index: {}]
  %s3 = inlined_call_operand.vmem [shape: f32[64,32], index: 3, kind: input, shape index: {}]
  %s4 = inlined_call_operand.vmem [shape: f32[1,32], index: 4, kind: input, shape index: {}]
  %s5 = inlined_call_operand.hbm [shape: f32[16,32], index: 5, kind: output, shape index: {}]
  %s6 = sld [smem:[#allocation0]]
  $region30: #{feed_forward.1} parent=0
    _
  %s8 = ssub.s32 1, %s6
  %s9 = scalar_select 0, %s8, %s6
  $region1: #{feed_forward.1} parent=0
    #allocation2 [shape = 'u8[8192]{0}', space=vmem, size = 0x2000, scoped, tag = 'output window, operand 0, single buffered']
    #allocation3 [shape = 's32[1]{0}', space=sflag, size = 0x4, scoped, tag = 'scoped memory for feed_forward.1']
    %10 = vsyncpa [#allocation3], 0
    // Predicated region
    $region2: #{feed_forward.1} parent=1 // pred_check
      _
    $region3: #{feed_forward.1} parent=1 // pred_check_branch
      %12 = sbr.rel (0) target = $region5
    $region4: #{feed_forward.1} parent=1 // pred_region
      _
    $region5: #{feed_forward.1} parent=1 // pred_fallthru
      _
    // Predicated region
    $region6: #{feed_forward.1} parent=1 // pred_check
      _
    $region7: #{feed_forward.1} parent=1 // pred_check_branch
      %14 = sbr.rel (0) target = $region9
    $region8: #{feed_forward.1} parent=1 // pred_region
      _
    $region9: #{feed_forward.1} parent=1 // pred_fallthru
      _
    // Predicated region
    $region10: #{feed_forward.1} parent=1 // pred_check
      _
    $region11: #{feed_forward.1} parent=1 // pred_check_branch
      %16 = sbr.rel (0) target = $region13
    $region12: #{feed_forward.1} parent=1 // pred_region
      _
    $region13: #{feed_forward.1} parent=1 // pred_fallthru
      _
    // Predicated region
    $region14: #{feed_forward.1} parent=1 // pred_check
      _
    $region15: #{feed_forward.1} parent=1 // pred_check_branch
      %18 = sbr.rel (0) target = $region17
    $region16: #{feed_forward.1} parent=1 // pred_region
      _
    $region17: #{feed_forward.1} parent=1 // pred_fallthru
      _
    // Predicated region
    $region18: #{feed_forward.1} parent=1 // pred_check
      _
    $region19: #{feed_forward.1} parent=1 // pred_check_branch
      %20 = sbr.rel (0) target = $region21
    $region20: #{feed_forward.1} parent=1 // pred_region
      _
    $region21: #{feed_forward.1} parent=1 // pred_fallthru
      _
    %v21 = vld [vmem:[%s0] sm:$0xff]
    %v22 = vld [vmem:[%s0 + $0x8] sm:$0xff]
    %v23 = vld [vmem:[%s1] sm:$0xff]
    %v24 = vld [vmem:[%s1 + $0x8] sm:$0xff]
    %v25 = vld [vmem:[%s1 + $0x10] sm:$0xff]
    %v26 = vld [vmem:[%s1 + $0x18] sm:$0xff]
    %v27 = vld [vmem:[%s2] sm:$0x1]
    %v29 = vperm.slane %v27, 0
    %vm31 = vcmask 261120
    %v33 = vsel %vm31, %v21, 0
    %v36 = vsel %vm31, %v22, 0
    %38 = vmatpush.msra.mxu0 0.0
    %39 = vmatpush.msra.mxu0 0.0
    %40 = vmatpush.msra.mxu0 0.0
    %41 = vmatpush.msra.mxu0 0.0
    %42 = vmatpush.msra.mxu0 0.0
    %43 = vmatpush.msra.mxu0 0.0
    %44 = vmatpush.msra.mxu0 0.0
    %45 = vmatpush.msra.mxu0 0.0
    %46 = vmatpush.msra.mxu0 0.0
    %47 = vmatpush.msra.mxu0 0.0
    %48 = vmatpush.msra.mxu0 0.0
    %49 = vmatpush.msra.mxu0 0.0
    %v50 = vand.u32 %v26, 4294901760
    %51 = vmatpush.msra.mxu0 %v50
    %v52 = vand.u32 %v25, 4294901760
    %53 = vmatpush.msra.mxu0 %v52
    %v54 = vand.u32 %v24, 4294901760
    %55 = vmatpush.msra.mxu0 %v54
    %v56 = vand.u32 %v23, 4294901760
    %57 = vmatpush.msra.mxu0 %v56
    %v58 = vand.u32 %v33, 4294901760
    %v59 = vsub.f32 %v33, %v58
    %v60 = vand.u32 %v59, 4294901760
    %v61 = vsub.f32 %v59, %v60
    %v62 = vand.u32 %v61, 4294901760
    %63 = vmatmul.f32.gmra.mxu0 %v62
    %v64 = vpop.f32.mrf.mxu0
    %v65 = vadd.f32 %v29, %v64
    %v66 = vand.u32 %v36, 4294901760
    %v67 = vsub.f32 %v36, %v66
    %v68 = vand.u32 %v67, 4294901760
    %v69 = vsub.f32 %v67, %v68
    %v70 = vand.u32 %v69, 4294901760
    %71 = vmatmul.f32.gmra.mxu0 %v70
    %v72 = vpop.f32.mrf.mxu0
    %v73 = vadd.f32 %v29, %v72
    %74 = vdwg.mxu0
    %75 = vmatpush.msra.mxu0 0.0
    %76 = vmatpush.msra.mxu0 0.0
    %77 = vmatpush.msra.mxu0 0.0
    %78 = vmatpush.msra.mxu0 0.0
    %79 = vmatpush.msra.mxu0 0.0
    %80 = vmatpush.msra.mxu0 0.0
    %81 = vmatpush.msra.mxu0 0.0
    %82 = vmatpush.msra.mxu0 0.0
    %83 = vmatpush.msra.mxu0 0.0
    %84 = vmatpush.msra.mxu0 0.0
    %85 = vmatpush.msra.mxu0 0.0
    %86 = vmatpush.msra.mxu0 0.0
    %v87 = vand.u32 %v26, 4294901760
    %v88 = vsub.f32 %v26, %v87
    %v89 = vand.u32 %v88, 4294901760
    %v90 = vsub.f32 %v88, %v89
    %v91 = vand.u32 %v90, 4294901760
    %92 = vmatpush.msra.mxu0 %v91
    %v93 = vand.u32 %v25, 4294901760
    %v94 = vsub.f32 %v25, %v93
    %v95 = vand.u32 %v94, 4294901760
    %v96 = vsub.f32 %v94, %v95
    %v97 = vand.u32 %v96, 4294901760
    %98 = vmatpush.msra.mxu0 %v97
    %v99 = vand.u32 %v24, 4294901760
    %v100 = vsub.f32 %v24, %v99
    %v101 = vand.u32 %v100, 4294901760
    %v102 = vsub.f32 %v100, %v101
    %v103 = vand.u32 %v102, 4294901760
    %104 = vmatpush.msra.mxu0 %v103
    %v105 = vand.u32 %v23, 4294901760
    %v106 = vsub.f32 %v23, %v105
    %v107 = vand.u32 %v106, 4294901760
    %v108 = vsub.f32 %v106, %v107
    %v109 = vand.u32 %v108, 4294901760
    %110 = vmatpush.msra.mxu0 %v109
    %v111 = vand.u32 %v33, 4294901760
    %112 = vmatmul.f32.gmra.mxu0 %v111
    %v113 = vpop.f32.mrf.mxu0
    %v114 = vadd.f32 %v65, %v113
    %v115 = vand.u32 %v36, 4294901760
    %116 = vmatmul.f32.gmra.mxu0 %v115
    %v117 = vpop.f32.mrf.mxu0
    %v118 = vadd.f32 %v73, %v117
    %119 = vdwg.mxu0
    %120 = vmatpush.msra.mxu0 0.0
    %121 = vmatpush.msra.mxu0 0.0
    %122 = vmatpush.msra.mxu0 0.0
    %123 = vmatpush.msra.mxu0 0.0
    %124 = vmatpush.msra.mxu0 0.0
    %125 = vmatpush.msra.mxu0 0.0
    %126 = vmatpush.msra.mxu0 0.0
    %127 = vmatpush.msra.mxu0 0.0
    %128 = vmatpush.msra.mxu0 0.0
    %129 = vmatpush.msra.mxu0 0.0
    %130 = vmatpush.msra.mxu0 0.0
    %131 = vmatpush.msra.mxu0 0.0
    %v132 = vand.u32 %v26, 4294901760
    %v133 = vsub.f32 %v26, %v132
    %134 = vmatpush.msra.mxu0 %v133
    %v135 = vand.u32 %v25, 4294901760
    %v136 = vsub.f32 %v25, %v135
    %137 = vmatpush.msra.mxu0 %v136
    %v138 = vand.u32 %v24, 4294901760
    %v139 = vsub.f32 %v24, %v138
    %140 = vmatpush.msra.mxu0 %v139
    %v141 = vand.u32 %v23, 4294901760
    %v142 = vsub.f32 %v23, %v141
    %143 = vmatpush.msra.mxu0 %v142
    %v144 = vand.u32 %v33, 4294901760
    %v145 = vsub.f32 %v33, %v144
    %146 = vmatmul.f32.gmra.mxu0 %v145
    %v147 = vpop.f32.mrf.mxu0
    %v148 = vadd.f32 %v114, %v147
    %v149 = vand.u32 %v36, 4294901760
    %v150 = vsub.f32 %v36, %v149
    %151 = vmatmul.f32.gmra.mxu0 %v150
    %v152 = vpop.f32.mrf.mxu0
    %v153 = vadd.f32 %v118, %v152
    %154 = vdwg.mxu0
    %155 = vmatpush.msra.mxu0 0.0
    %156 = vmatpush.msra.mxu0 0.0
    %157 = vmatpush.msra.mxu0 0.0
    %158 = vmatpush.msra.mxu0 0.0
    %159 = vmatpush.msra.mxu0 0.0
    %160 = vmatpush.msra.mxu0 0.0
    %161 = vmatpush.msra.mxu0 0.0
    %162 = vmatpush.msra.mxu0 0.0
    %163 = vmatpush.msra.mxu0 0.0
    %164 = vmatpush.msra.mxu0 0.0
    %165 = vmatpush.msra.mxu0 0.0
    %166 = vmatpush.msra.mxu0 0.0
    %v167 = vand.u32 %v26, 4294901760
    %168 = vmatpush.msra.mxu0 %v167
    %v169 = vand.u32 %v25, 4294901760
    %170 = vmatpush.msra.mxu0 %v169
    %v171 = vand.u32 %v24, 4294901760
    %172 = vmatpush.msra.mxu0 %v171
    %v173 = vand.u32 %v23, 4294901760
    %174 = vmatpush.msra.mxu0 %v173
    %v175 = vand.u32 %v33, 4294901760
    %v176 = vsub.f32 %v33, %v175
    %v177 = vand.u32 %v176, 4294901760
    %178 = vmatmul.f32.gmra.mxu0 %v177
    %v179 = vpop.f32.mrf.mxu0
    %v180 = vadd.f32 %v148, %v179
    %v181 = vand.u32 %v36, 4294901760
    %v182 = vsub.f32 %v36, %v181
    %v183 = vand.u32 %v182, 4294901760
    %184 = vmatmul.f32.gmra.mxu0 %v183
    %v185 = vpop.f32.mrf.mxu0
    %v186 = vadd.f32 %v153, %v185
    %187 = vdwg.mxu0
    %188 = vmatpush.msra.mxu0 0.0
    %189 = vmatpush.msra.mxu0 0.0
    %190 = vmatpush.msra.mxu0 0.0
    %191 = vmatpush.msra.mxu0 0.0
    %192 = vmatpush.msra.mxu0 0.0
    %193 = vmatpush.msra.mxu0 0.0
    %194 = vmatpush.msra.mxu0 0.0
    %195 = vmatpush.msra.mxu0 0.0
    %196 = vmatpush.msra.mxu0 0.0
    %197 = vmatpush.msra.mxu0 0.0
    %198 = vmatpush.msra.mxu0 0.0
    %199 = vmatpush.msra.mxu0 0.0
    %v200 = vand.u32 %v26, 4294901760
    %v201 = vsub.f32 %v26, %v200
    %v202 = vand.u32 %v201, 4294901760
    %203 = vmatpush.msra.mxu0 %v202
    %v204 = vand.u32 %v25, 4294901760
    %v205 = vsub.f32 %v25, %v204
    %v206 = vand.u32 %v205, 4294901760
    %207 = vmatpush.msra.mxu0 %v206
    %v208 = vand.u32 %v24, 4294901760
    %v209 = vsub.f32 %v24, %v208
    %v210 = vand.u32 %v209, 4294901760
    %211 = vmatpush.msra.mxu0 %v210
    %v212 = vand.u32 %v23, 4294901760
    %v213 = vsub.f32 %v23, %v212
    %v214 = vand.u32 %v213, 4294901760
    %215 = vmatpush.msra.mxu0 %v214
    %v216 = vand.u32 %v33, 4294901760
    %217 = vmatmul.f32.gmra.mxu0 %v216
    %v218 = vpop.f32.mrf.mxu0
    %v219 = vadd.f32 %v180, %v218
    %v220 = vand.u32 %v36, 4294901760
    %221 = vmatmul.f32.gmra.mxu0 %v220
    %v222 = vpop.f32.mrf.mxu0
    %v223 = vadd.f32 %v186, %v222
    %224 = vdwg.mxu0
    %225 = vmatpush.msra.mxu0 0.0
    %226 = vmatpush.msra.mxu0 0.0
    %227 = vmatpush.msra.mxu0 0.0
    %228 = vmatpush.msra.mxu0 0.0
    %229 = vmatpush.msra.mxu0 0.0
    %230 = vmatpush.msra.mxu0 0.0
    %231 = vmatpush.msra.mxu0 0.0
    %232 = vmatpush.msra.mxu0 0.0
    %233 = vmatpush.msra.mxu0 0.0
    %234 = vmatpush.msra.mxu0 0.0
    %235 = vmatpush.msra.mxu0 0.0
    %236 = vmatpush.msra.mxu0 0.0
    %v237 = vand.u32 %v26, 4294901760
    %238 = vmatpush.msra.mxu0 %v237
    %v239 = vand.u32 %v25, 4294901760
    %240 = vmatpush.msra.mxu0 %v239
    %v241 = vand.u32 %v24, 4294901760
    %242 = vmatpush.msra.mxu0 %v241
    %v243 = vand.u32 %v23, 4294901760
    %244 = vmatpush.msra.mxu0 %v243
    %v245 = vand.u32 %v33, 4294901760
    %246 = vmatmul.f32.gmra.mxu0 %v245
    %v247 = vpop.f32.mrf.mxu0
    %v248 = vadd.f32 %v219, %v247
    %v249 = vand.u32 %v36, 4294901760
    %250 = vmatmul.f32.gmra.mxu0 %v249
    %v251 = vpop.f32.mrf.mxu0
    %v252 = vadd.f32 %v223, %v251
    %253 = vdwg.mxu0
    %v254 = vxor.u32 %v248, 2147483648
    %v255 = vxor.u32 %v252, 2147483648
    %v256 = vmul.f32 %v254, 1.442695
    %v257 = vpow.pop %v256
    %v258 = vmul.f32 %v255, 1.442695
    %v259 = vpow.pop %v258
    %v260 = vadd.f32 %v257, 1.0
    %v261 = vadd.f32 %v259, 1.0
    %v262 = vrcp.pop %v260
    %v263 = vmul.f32 %v260, %v262
    %v264 = vsub.f32 1.0, %v263
    %v265 = vmul.f32 %v262, %v264
    %v266 = vadd.f32 %v262, %v265
    %vm267 = vweird.f32 %v260
    %vm268 = vweird.f32 %v262
    %vm269 = vmor %vm267, %vm268
    %v270 = vsel %vm269, %v262, %v266
    %v271 = vand.u32 2147483647, %v260
    %vm272 = vcmp.eq.f32.partialorder %v271, 8.507059e+37
    %v273 = vand.u32 %v260, 2147483648
    %v274 = vor.u32 1.1754944e-38, %v273
    %v275 = vsel %vm272, %v274, %v270
    %v276 = vmul.f32 1.0, %v275
    %v277 = vrcp.pop %v261
    %v278 = vmul.f32 %v261, %v277
    %v279 = vsub.f32 1.0, %v278
    %v280 = vmul.f32 %v277, %v279
    %v281 = vadd.f32 %v277, %v280
    %vm282 = vweird.f32 %v261
    %vm283 = vweird.f32 %v277
    %vm284 = vmor %vm282, %vm283
    %v285 = vsel %vm284, %v277, %v281
    %v286 = vand.u32 2147483647, %v261
    %vm287 = vcmp.eq.f32.partialorder %v286, 8.507059e+37
    %v288 = vand.u32 %v261, 2147483648
    %v289 = vor.u32 1.1754944e-38, %v288
    %v290 = vsel %vm287, %v289, %v285
    %v291 = vmul.f32 1.0, %v290
    %v292 = vmul.f32 %v248, %v276
    %v293 = vmul.f32 %v252, %v291
    %v294 = vld [vmem:[%s3] sm:$0xff]
    %v295 = vld [vmem:[%s3 + $0x8] sm:$0xff]
    %v296 = vld [vmem:[%s3 + $0x10] sm:$0xff]
    %v297 = vld [vmem:[%s3 + $0x18] sm:$0xff]
    %v298 = vld [vmem:[%s3 + $0x20] sm:$0xff]
    %v299 = vld [vmem:[%s3 + $0x28] sm:$0xff]
    %v300 = vld [vmem:[%s3 + $0x30] sm:$0xff]
    %v301 = vld [vmem:[%s3 + $0x38] sm:$0xff]
    %v302 = vld [vmem:[%s4] sm:$0x1]
    %v304 = vperm.slane %v302, 0
    %vm306 = vcmask 523264
    %v308 = vsel %vm306, %v292, 0
    %v311 = vsel %vm306, %v293, 0
    %313 = vmatpush.msra.mxu0 0.0
    %314 = vmatpush.msra.mxu0 0.0
    %315 = vmatpush.msra.mxu0 0.0
    %316 = vmatpush.msra.mxu0 0.0
    %317 = vmatpush.msra.mxu0 0.0
    %318 = vmatpush.msra.mxu0 0.0
    %319 = vmatpush.msra.mxu0 0.0
    %320 = vmatpush.msra.mxu0 0.0
    %v321 = vand.u32 %v301, 4294901760
    %322 = vmatpush.msra.mxu0 %v321
    %v323 = vand.u32 %v300, 4294901760
    %324 = vmatpush.msra.mxu0 %v323
    %v325 = vand.u32 %v299, 4294901760
    %326 = vmatpush.msra.mxu0 %v325
    %v327 = vand.u32 %v298, 4294901760
    %328 = vmatpush.msra.mxu0 %v327
    %v329 = vand.u32 %v297, 4294901760
    %330 = vmatpush.msra.mxu0 %v329
    %v331 = vand.u32 %v296, 4294901760
    %332 = vmatpush.msra.mxu0 %v331
    %v333 = vand.u32 %v295, 4294901760
    %334 = vmatpush.msra.mxu0 %v333
    %v335 = vand.u32 %v294, 4294901760
    %336 = vmatpush.msra.mxu0 %v335
    %v337 = vand.u32 %v308, 4294901760
    %v338 = vsub.f32 %v308, %v337
    %v339 = vand.u32 %v338, 4294901760
    %v340 = vsub.f32 %v338, %v339
    %v341 = vand.u32 %v340, 4294901760
    %342 = vmatmul.f32.gmra.mxu0 %v341
    %v343 = vpop.f32.mrf.mxu0
    %v344 = vadd.f32 %v304, %v343
    %v345 = vand.u32 %v311, 4294901760
    %v346 = vsub.f32 %v311, %v345
    %v347 = vand.u32 %v346, 4294901760
    %v348 = vsub.f32 %v346, %v347
    %v349 = vand.u32 %v348, 4294901760
    %350 = vmatmul.f32.gmra.mxu0 %v349
    %v351 = vpop.f32.mrf.mxu0
    %v352 = vadd.f32 %v304, %v351
    %353 = vdwg.mxu0
    %354 = vmatpush.msra.mxu0 0.0
    %355 = vmatpush.msra.mxu0 0.0
    %356 = vmatpush.msra.mxu0 0.0
    %357 = vmatpush.msra.mxu0 0.0
    %358 = vmatpush.msra.mxu0 0.0
    %359 = vmatpush.msra.mxu0 0.0
    %360 = vmatpush.msra.mxu0 0.0
    %361 = vmatpush.msra.mxu0 0.0
    %v362 = vand.u32 %v301, 4294901760
    %v363 = vsub.f32 %v301, %v362
    %v364 = vand.u32 %v363, 4294901760
    %v365 = vsub.f32 %v363, %v364
    %v366 = vand.u32 %v365, 4294901760
    %367 = vmatpush.msra.mxu0 %v366
    %v368 = vand.u32 %v300, 4294901760
    %v369 = vsub.f32 %v300, %v368
    %v370 = vand.u32 %v369, 4294901760
    %v371 = vsub.f32 %v369, %v370
    %v372 = vand.u32 %v371, 4294901760
    %373 = vmatpush.msra.mxu0 %v372
    %v374 = vand.u32 %v299, 4294901760
    %v375 = vsub.f32 %v299, %v374
    %v376 = vand.u32 %v375, 4294901760
    %v377 = vsub.f32 %v375, %v376
    %v378 = vand.u32 %v377, 4294901760
    %379 = vmatpush.msra.mxu0 %v378
    %v380 = vand.u32 %v298, 4294901760
    %v381 = vsub.f32 %v298, %v380
    %v382 = vand.u32 %v381, 4294901760
    %v383 = vsub.f32 %v381, %v382
    %v384 = vand.u32 %v383, 4294901760
    %385 = vmatpush.msra.mxu0 %v384
    %v386 = vand.u32 %v297, 4294901760
    %v387 = vsub.f32 %v297, %v386
    %v388 = vand.u32 %v387, 4294901760
    %v389 = vsub.f32 %v387, %v388
    %v390 = vand.u32 %v389, 4294901760
    %391 = vmatpush.msra.mxu0 %v390
    %v392 = vand.u32 %v296, 4294901760
    %v393 = vsub.f32 %v296, %v392
    %v394 = vand.u32 %v393, 4294901760
    %v395 = vsub.f32 %v393, %v394
    %v396 = vand.u32 %v395, 4294901760
    %397 = vmatpush.msra.mxu0 %v396
    %v398 = vand.u32 %v295, 4294901760
    %v399 = vsub.f32 %v295, %v398
    %v400 = vand.u32 %v399, 4294901760
    %v401 = vsub.f32 %v399, %v400
    %v402 = vand.u32 %v401, 4294901760
    %403 = vmatpush.msra.mxu0 %v402
    %v404 = vand.u32 %v294, 4294901760
    %v405 = vsub.f32 %v294, %v404
    %v406 = vand.u32 %v405, 4294901760
    %v407 = vsub.f32 %v405, %v406
    %v408 = vand.u32 %v407, 4294901760
    %409 = vmatpush.msra.mxu0 %v408
    %v410 = vand.u32 %v308, 4294901760
    %411 = vmatmul.f32.gmra.mxu0 %v410
    %v412 = vpop.f32.mrf.mxu0
    %v413 = vadd.f32 %v344, %v412
    %v414 = vand.u32 %v311, 4294901760
    %415 = vmatmul.f32.gmra.mxu0 %v414
    %v416 = vpop.f32.mrf.mxu0
    %v417 = vadd.f32 %v352, %v416
    %418 = vdwg.mxu0
    %419 = vmatpush.msra.mxu0 0.0
    %420 = vmatpush.msra.mxu0 0.0
    %421 = vmatpush.msra.mxu0 0.0
    %422 = vmatpush.msra.mxu0 0.0
    %423 = vmatpush.msra.mxu0 0.0
    %424 = vmatpush.msra.mxu0 0.0
    %425 = vmatpush.msra.mxu0 0.0
    %426 = vmatpush.msra.mxu0 0.0
    %v427 = vand.u32 %v301, 4294901760
    %v428 = vsub.f32 %v301, %v427
    %429 = vmatpush.msra.mxu0 %v428
    %v430 = vand.u32 %v300, 4294901760
    %v431 = vsub.f32 %v300, %v430
    %432 = vmatpush.msra.mxu0 %v431
    %v433 = vand.u32 %v299, 4294901760
    %v434 = vsub.f32 %v299, %v433
    %435 = vmatpush.msra.mxu0 %v434
    %v436 = vand.u32 %v298, 4294901760
    %v437 = vsub.f32 %v298, %v436
    %438 = vmatpush.msra.mxu0 %v437
    %v439 = vand.u32 %v297, 4294901760
    %v440 = vsub.f32 %v297, %v439
    %441 = vmatpush.msra.mxu0 %v440
    %v442 = vand.u32 %v296, 4294901760
    %v443 = vsub.f32 %v296, %v442
    %444 = vmatpush.msra.mxu0 %v443
    %v445 = vand.u32 %v295, 4294901760
    %v446 = vsub.f32 %v295, %v445
    %447 = vmatpush.msra.mxu0 %v446
    %v448 = vand.u32 %v294, 4294901760
    %v449 = vsub.f32 %v294, %v448
    %450 = vmatpush.msra.mxu0 %v449
    %v451 = vand.u32 %v308, 4294901760
    %v452 = vsub.f32 %v308, %v451
    %453 = vmatmul.f32.gmra.mxu0 %v452
    %v454 = vpop.f32.mrf.mxu0
    %v455 = vadd.f32 %v413, %v454
    %v456 = vand.u32 %v311, 4294901760
    %v457 = vsub.f32 %v311, %v456
    %458 = vmatmul.f32.gmra.mxu0 %v457
    %v459 = vpop.f32.mrf.mxu0
    %v460 = vadd.f32 %v417, %v459
    %461 = vdwg.mxu0
    %462 = vmatpush.msra.mxu0 0.0
    %463 = vmatpush.msra.mxu0 0.0
    %464 = vmatpush.msra.mxu0 0.0
    %465 = vmatpush.msra.mxu0 0.0
    %466 = vmatpush.msra.mxu0 0.0
    %467 = vmatpush.msra.mxu0 0.0
    %468 = vmatpush.msra.mxu0 0.0
    %469 = vmatpush.msra.mxu0 0.0
    %v470 = vand.u32 %v301, 4294901760
    %471 = vmatpush.msra.mxu0 %v470
    %v472 = vand.u32 %v300, 4294901760
    %473 = vmatpush.msra.mxu0 %v472
    %v474 = vand.u32 %v299, 4294901760
    %475 = vmatpush.msra.mxu0 %v474
    %v476 = vand.u32 %v298, 4294901760
    %477 = vmatpush.msra.mxu0 %v476
    %v478 = vand.u32 %v297, 4294901760
    %479 = vmatpush.msra.mxu0 %v478
    %v480 = vand.u32 %v296, 4294901760
    %481 = vmatpush.msra.mxu0 %v480
    %v482 = vand.u32 %v295, 4294901760
    %483 = vmatpush.msra.mxu0 %v482
    %v484 = vand.u32 %v294, 4294901760
    %485 = vmatpush.msra.mxu0 %v484
    %v486 = vand.u32 %v308, 4294901760
    %v487 = vsub.f32 %v308, %v486
    %v488 = vand.u32 %v487, 4294901760
    %489 = vmatmul.f32.gmra.mxu0 %v488
    %v490 = vpop.f32.mrf.mxu0
    %v491 = vadd.f32 %v455, %v490
    %v492 = vand.u32 %v311, 4294901760
    %v493 = vsub.f32 %v311, %v492
    %v494 = vand.u32 %v493, 4294901760
    %495 = vmatmul.f32.gmra.mxu0 %v494
    %v496 = vpop.f32.mrf.mxu0
    %v497 = vadd.f32 %v460, %v496
    %498 = vdwg.mxu0
    %499 = vmatpush.msra.mxu0 0.0
    %500 = vmatpush.msra.mxu0 0.0
    %501 = vmatpush.msra.mxu0 0.0
    %502 = vmatpush.msra.mxu0 0.0
    %503 = vmatpush.msra.mxu0 0.0
    %504 = vmatpush.msra.mxu0 0.0
    %505 = vmatpush.msra.mxu0 0.0
    %506 = vmatpush.msra.mxu0 0.0
    %v507 = vand.u32 %v301, 4294901760
    %v508 = vsub.f32 %v301, %v507
    %v509 = vand.u32 %v508, 4294901760
    %510 = vmatpush.msra.mxu0 %v509
    %v511 = vand.u32 %v300, 4294901760
    %v512 = vsub.f32 %v300, %v511
    %v513 = vand.u32 %v512, 4294901760
    %514 = vmatpush.msra.mxu0 %v513
    %v515 = vand.u32 %v299, 4294901760
    %v516 = vsub.f32 %v299, %v515
    %v517 = vand.u32 %v516, 4294901760
    %518 = vmatpush.msra.mxu0 %v517
    %v519 = vand.u32 %v298, 4294901760
    %v520 = vsub.f32 %v298, %v519
    %v521 = vand.u32 %v520, 4294901760
    %522 = vmatpush.msra.mxu0 %v521
    %v523 = vand.u32 %v297, 4294901760
    %v524 = vsub.f32 %v297, %v523
    %v525 = vand.u32 %v524, 4294901760
    %526 = vmatpush.msra.mxu0 %v525
    %v527 = vand.u32 %v296, 4294901760
    %v528 = vsub.f32 %v296, %v527
    %v529 = vand.u32 %v528, 4294901760
    %530 = vmatpush.msra.mxu0 %v529
    %v531 = vand.u32 %v295, 4294901760
    %v532 = vsub.f32 %v295, %v531
    %v533 = vand.u32 %v532, 4294901760
    %534 = vmatpush.msra.mxu0 %v533
    %v535 = vand.u32 %v294, 4294901760
    %v536 = vsub.f32 %v294, %v535
    %v537 = vand.u32 %v536, 4294901760
    %538 = vmatpush.msra.mxu0 %v537
    %v539 = vand.u32 %v308, 4294901760
    %540 = vmatmul.f32.gmra.mxu0 %v539
    %v541 = vpop.f32.mrf.mxu0
    %v542 = vadd.f32 %v491, %v541
    %v543 = vand.u32 %v311, 4294901760
    %544 = vmatmul.f32.gmra.mxu0 %v543
    %v545 = vpop.f32.mrf.mxu0
    %v546 = vadd.f32 %v497, %v545
    %547 = vdwg.mxu0
    %548 = vmatpush.msra.mxu0 0.0
    %549 = vmatpush.msra.mxu0 0.0
    %550 = vmatpush.msra.mxu0 0.0
    %551 = vmatpush.msra.mxu0 0.0
    %552 = vmatpush.msra.mxu0 0.0
    %553 = vmatpush.msra.mxu0 0.0
    %554 = vmatpush.msra.mxu0 0.0
    %555 = vmatpush.msra.mxu0 0.0
    %v556 = vand.u32 %v301, 4294901760
    %557 = vmatpush.msra.mxu0 %v556
    %v558 = vand.u32 %v300, 4294901760
    %559 = vmatpush.msra.mxu0 %v558
    %v560 = vand.u32 %v299, 4294901760
    %561 = vmatpush.msra.mxu0 %v560
    %v562 = vand.u32 %v298, 4294901760
    %563 = vmatpush.msra.mxu0 %v562
    %v564 = vand.u32 %v297, 4294901760
    %565 = vmatpush.msra.mxu0 %v564
    %v566 = vand.u32 %v296, 4294901760
    %567 = vmatpush.msra.mxu0 %v566
    %v568 = vand.u32 %v295, 4294901760
    %569 = vmatpush.msra.mxu0 %v568
    %v570 = vand.u32 %v294, 4294901760
    %571 = vmatpush.msra.mxu0 %v570
    %v572 = vand.u32 %v308, 4294901760
    %573 = vmatmul.f32.gmra.mxu0 %v572
    %v574 = vpop.f32.mrf.mxu0
    %v575 = vadd.f32 %v542, %v574
    %v576 = vand.u32 %v311, 4294901760
    %577 = vmatmul.f32.gmra.mxu0 %v576
    %v578 = vpop.f32.mrf.mxu0
    %v579 = vadd.f32 %v546, %v578
    %580 = vdwg.mxu0
    %581 = vst.msk [vmem:[#allocation2] sm:$0xff] %vm31, %v575
    %582 = vst.msk [vmem:[#allocation2 + $0x8] sm:$0xff] %vm31, %v579
    // Predicated region
    $region22: #{feed_forward.1} parent=1 // pred_check
      _
    $region23: #{feed_forward.1} parent=1 // pred_check_branch
      %584 = sbr.rel (0) target = $region25
    $region24: #{feed_forward.1} parent=1 // pred_region
      %586 = vsyncadd [#allocation3], 0
      %s587 = sshll.u32 [#allocation2], 4
      %s588 = int_to_ptr.vmem [resolvable:$true] %s587
      %s589 = sshll.u32 %s5, 4
      %s590 = int_to_ptr.hbm [resolvable:$true] %s589
      %595 = dma.vmem_to_hbm [thread:$0]  %s588, 256, %s590, [#allocation3], 128, 128, 8
    $region25: #{feed_forward.1} parent=1 // pred_fallthru
      _
    // Predicated region
    $region26: #{feed_forward.1} parent=1 // pred_check
      _
    $region27: #{feed_forward.1} parent=1 // pred_check_branch
      %597 = sbr.rel (0) target = $region29
    $region28: #{feed_forward.1} parent=1 // pred_region
      %599 = dma.done [#allocation3], 256
    $region29: #{feed_forward.1} parent=1 // pred_fallthru
      _
    %600 = vsyncpa [#allocation3], 1

</llo_original>
